<compile_context>
chip_gen: v6e
topology: v6e:2x2x1
jax: 0.10.0
libtpu: 0.0.40
codegen_flags: <defaults>
</compile_context>

<pallas_src>
import jax
import jax.numpy as jnp
from jax.experimental import pallas as pl
from jax.experimental.pallas import tpu as pltpu


def _round_up(x, m):
    return (x + m - 1) // m * m


def film_kernel(pitch_ref, timbre_ref, w_ref, b_ref, o_ref):
    """One batch tile: fused matmul -> [scale | shift] strips -> FiLM."""
    p = o_ref.shape[-1]                  # true pitch dim (may be lane-unaligned)
    p_pad = w_ref.shape[-1] // 2         # 128-aligned stride inside the fused weight
    y = jnp.dot(timbre_ref[...], w_ref[...],
                preferred_element_type=jnp.float32) + b_ref[...]
    scale = y[:, :p]                     # aligned when p % 128 == 0 (common case)
    shift = y[:, p_pad:p_pad + p]        # start is always 128-aligned
    o_ref[...] = (scale * pitch_ref[...].astype(jnp.float32)
                  + shift).astype(o_ref.dtype)


def fuse_film_params(w_scale, b_scale, w_shift, b_shift):
    """Build fused weight/bias ONCE (hoisted out of the per-call path).

    Weights are (timbre_dim, pitch_dim) — transpose of PyTorch Linear's
    (out, in) — so the kernel does `timbre @ W`.  Only the weights/bias are
    lane-padded; activations and outputs are never padded or copied.
    """
    timbre_dim, pitch_dim = w_scale.shape
    p_pad = _round_up(pitch_dim, 128)
    w_fused = jnp.zeros((timbre_dim, 2 * p_pad), w_scale.dtype)
    w_fused = w_fused.at[:, :pitch_dim].set(w_scale)
    w_fused = w_fused.at[:, p_pad:p_pad + pitch_dim].set(w_shift)
    b_fused = jnp.zeros((1, 2 * p_pad), b_scale.dtype)
    b_fused = b_fused.at[0, :pitch_dim].set(b_scale.reshape(-1))
    b_fused = b_fused.at[0, p_pad:p_pad + pitch_dim].set(b_shift.reshape(-1))
    return w_fused, b_fused


def _choose_batch_tile(B, pitch_dim, timbre_dim, p_pad, itemsize):
    """VMEM-aware batch tile.

    Budget counts double-buffered pitch/out/timbre tiles plus the f32
    intermediate y = (tile, 2*p_pad).  Cap at 512 rows to limit vreg spill
    of y; target >= 4 grid steps so both v7x TensorCores get >= 2 steps
    (pipeline overlap); tiny problems use a single block.
    """
    per_row = 2 * itemsize * (2 * pitch_dim + timbre_dim) + 4 * 2 * p_pad
    budget = 16 * 1024 * 1024                      # tile budget; headroom in 64 MiB VMEM
    vmem_cap = max(32, (budget // per_row) // 32 * 32)
    vmem_cap = min(vmem_cap, 512)

    # Single-block fast path: each grid step costs ~0.35 us; don't split tiny work.
    if B <= min(256, vmem_cap) and B * max(p_pad, 128) * itemsize <= (2 << 20):
        return B                                   # block dim == full array dim: always legal

    tile = _round_up(pl.cdiv(B, 4), 32)            # >= 2 steps per v7x core when possible
    return max(32, min(tile, vmem_cap))


def film_forward(pitch_latent, timbre_latent, w_fused, b_fused, *, batch_tile=None):
    B, pitch_dim = pitch_latent.shape
    Bt, timbre_dim = timbre_latent.shape
    assert Bt == B
    assert w_fused.shape[0] == timbre_dim
    two_p_pad = w_fused.shape[-1]
    p_pad = two_p_pad // 2
    assert p_pad >= pitch_dim
    itemsize = pitch_latent.dtype.itemsize

    tile = batch_tile if batch_tile is not None else _choose_batch_tile(
        B, pitch_dim, timbre_dim, p_pad, itemsize)

    grid = (pl.cdiv(B, tile),)                     # ragged last block: stores are masked

    # Explicit VMEM limit: double-buffered tiles + weights + f32 intermediate + slack.
    est = (2 * tile * (2 * pitch_dim + timbre_dim) * itemsize
           + 2 * timbre_dim * two_p_pad * w_fused.dtype.itemsize
           + tile * two_p_pad * 4
           + (1 << 20))
    vmem_limit = int(min(max(2 * est, 8 << 20), 48 << 20))

    return pl.pallas_call(
        film_kernel,
        out_shape=jax.ShapeDtypeStruct((B, pitch_dim), pitch_latent.dtype),
        grid_spec=pltpu.PrefetchScalarGridSpec(
            num_scalar_prefetch=0,
            grid=grid,
            in_specs=[
                pl.BlockSpec((tile, pitch_dim), lambda i: (i, 0)),        # pitch
                pl.BlockSpec((tile, timbre_dim), lambda i: (i, 0)),       # timbre
                pl.BlockSpec((timbre_dim, two_p_pad), lambda i: (0, 0)),  # fused W (constant)
                pl.BlockSpec((1, two_p_pad), lambda i: (0, 0)),           # fused bias (constant)
            ],
            out_specs=pl.BlockSpec((tile, pitch_dim), lambda i: (i, 0)),
        ),
        compiler_params=pltpu.CompilerParams(
            dimension_semantics=("parallel",),
            vmem_limit_bytes=vmem_limit),
    )(pitch_latent, timbre_latent, w_fused, b_fused)


def init_film_params(key, pitch_dim, timbre_dim, dtype=jnp.float32):
    """nn.Linear-style init (uniform +-1/sqrt(fan_in)); weights pre-transposed."""
    k1, k2, k3, k4 = jax.random.split(key, 4)
    bound = 1.0 / jnp.sqrt(timbre_dim)
    w_scale = jax.random.uniform(k1, (timbre_dim, pitch_dim), dtype, -bound, bound)
    b_scale = jax.random.uniform(k2, (pitch_dim,), dtype, -bound, bound)
    w_shift = jax.random.uniform(k3, (timbre_dim, pitch_dim), dtype, -bound, bound)
    b_shift = jax.random.uniform(k4, (pitch_dim,), dtype, -bound, bound)
    return w_scale, b_scale, w_shift, b_shift


if __name__ == "__main__":
    key = jax.random.PRNGKey(0)
    k_pitch, k_timbre, k_params, k_pitch2, k_timbre2 = jax.random.split(key, 5)

    B, pitch_dim, timbre_dim = 64, 64, 32

    pitch_latent = jax.random.normal(k_pitch, (B, pitch_dim), jnp.float32)
    timbre_latent = jax.random.normal(k_timbre, (B, timbre_dim), jnp.float32)
    w_scale, b_scale, w_shift, b_shift = init_film_params(
        k_params, pitch_dim, timbre_dim)

    # Fused params built once (outside the forward path).
    w_fused, b_fused = fuse_film_params(w_scale, b_scale, w_shift, b_shift)

    def ref_fn(p, t):
        return (t @ w_scale + b_scale[None, :]) * p + (t @ w_shift + b_shift[None, :])

    # Check 1: single-block fast path (tile == B, grid = 1).
    out = jax.block_until_ready(
        film_forward(pitch_latent, timbre_latent, w_fused, b_fused))
    assert out.shape == (B, pitch_dim)
    assert jnp.allclose(out, ref_fn(pitch_latent, timbre_latent), atol=1e-5, rtol=1e-5)

    # Check 2: ragged batch (B not a multiple of the tile) -> masked last block.
    B2 = 80
    pitch2 = jax.random.normal(k_pitch2, (B2, pitch_dim), jnp.float32)
    timbre2 = jax.random.normal(k_timbre2, (B2, timbre_dim), jnp.float32)
    out2 = jax.block_until_ready(
        film_forward(pitch2, timbre2, w_fused, b_fused, batch_tile=32))
    assert out2.shape == (B2, pitch_dim)
    assert jnp.allclose(out2, ref_fn(pitch2, timbre2), atol=1e-5, rtol=1e-5)

    print("KERNEL_OK")
</pallas_src>

<mosaic_0001>
module attributes {stable_mosaic.version = 11 : i64} {
  func.func @film_kernel(%arg0: i32, %arg1: memref<64x64xf32, #tpu.memory_space<vmem>>, %arg2: memref<64x32xf32, #tpu.memory_space<vmem>>, %arg3: memref<32x256xf32, #tpu.memory_space<vmem>>, %arg4: memref<1x256xf32, #tpu.memory_space<vmem>>, %arg5: memref<64x64xf32, #tpu.memory_space<vmem>>) attributes {dimension_semantics = [#tpu.dimension_semantics<parallel>], iteration_bounds = array<i64: 1>, scalar_prefetch = 0 : i64, scratch_operands = 0 : i64, tpu.core_type = #tpu.core_type<tc>, window_params = [{transform_indices = @transform_0, window_bounds = array<i64: 64, 64>}, {transform_indices = @transform_1, window_bounds = array<i64: 64, 32>}, {pipeline_mode = #tpu.pipeline_mode<synchronous>, transform_indices = @transform_2, window_bounds = array<i64: 32, 256>}, {pipeline_mode = #tpu.pipeline_mode<synchronous>, transform_indices = @transform_3, window_bounds = array<i64: 1, 256>}, {transform_indices = @transform_4, window_bounds = array<i64: 64, 64>}]} {
    %c0 = arith.constant 0 : index
    %c0_0 = arith.constant 0 : index
    %0 = vector.load %arg2[%c0, %c0_0] : memref<64x32xf32, #tpu.memory_space<vmem>>, vector<64x32xf32>
    %c0_1 = arith.constant 0 : index
    %c0_2 = arith.constant 0 : index
    %1 = vector.load %arg3[%c0_1, %c0_2] : memref<32x256xf32, #tpu.memory_space<vmem>>, vector<32x256xf32>
    %cst = arith.constant dense<0.000000e+00> : vector<64x256xf32>
    %2 = tpu.matmul %0, %1, %cst {dimension_numbers = #tpu.dot_dimension_numbers<[1], [0], [0], [1], [0, 0, 1, 1], [], []>} : vector<64x32xf32>, vector<32x256xf32>, vector<64x256xf32> -> vector<64x256xf32>
    %c0_3 = arith.constant 0 : index
    %c0_4 = arith.constant 0 : index
    %3 = vector.load %arg4[%c0_3, %c0_4] : memref<1x256xf32, #tpu.memory_space<vmem>>, vector<1x256xf32>
    %4 = vector.broadcast %3 : vector<1x256xf32> to vector<64x256xf32>
    %5 = arith.addf %2, %4 : vector<64x256xf32>
    %6 = vector.extract_strided_slice %5 {offsets = [0, 0], sizes = [64, 64], strides = [1, 1]} : vector<64x256xf32> to vector<64x64xf32>
    %7 = vector.extract_strided_slice %5 {offsets = [0, 128], sizes = [64, 64], strides = [1, 1]} : vector<64x256xf32> to vector<64x64xf32>
    %c0_5 = arith.constant 0 : index
    %c0_6 = arith.constant 0 : index
    %8 = vector.load %arg1[%c0_5, %c0_6] : memref<64x64xf32, #tpu.memory_space<vmem>>, vector<64x64xf32>
    %9 = arith.mulf %6, %8 : vector<64x64xf32>
    %10 = arith.addf %9, %7 : vector<64x64xf32>
    %c0_7 = arith.constant 0 : index
    %c0_8 = arith.constant 0 : index
    %11 = vector.load %arg5[%c0_7, %c0_8] : memref<64x64xf32, #tpu.memory_space<vmem>>, vector<64x64xf32>
    tpu.vector_store %arg5[%c0_7, %c0_8], %10 {strides = array<i32>} : memref<64x64xf32, #tpu.memory_space<vmem>>, vector<64x64xf32>,
    return
  }
  func.func @transform_0(%arg0: i32) -> (i32, i32) {
    %c0_i32 = arith.constant 0 : i32
    %c0_i32_0 = arith.constant 0 : i32
    return %arg0, %c0_i32 : i32, i32
  }
  func.func @transform_1(%arg0: i32) -> (i32, i32) {
    %c0_i32 = arith.constant 0 : i32
    %c0_i32_0 = arith.constant 0 : i32
    return %arg0, %c0_i32 : i32, i32
  }
  func.func @transform_2(%arg0: i32) -> (i32, i32) {
    %c0_i32 = arith.constant 0 : i32
    %c0_i32_0 = arith.constant 0 : i32
    %c0_i32_1 = arith.constant 0 : i32
    return %c0_i32, %c0_i32_0 : i32, i32
  }
  func.func @transform_3(%arg0: i32) -> (i32, i32) {
    %c0_i32 = arith.constant 0 : i32
    %c0_i32_0 = arith.constant 0 : i32
    %c0_i32_1 = arith.constant 0 : i32
    return %c0_i32, %c0_i32_0 : i32, i32
  }
  func.func @transform_4(%arg0: i32) -> (i32, i32) {
    %c0_i32 = arith.constant 0 : i32
    %c0_i32_0 = arith.constant 0 : i32
    return %arg0, %c0_i32 : i32, i32
  }
}

</mosaic_0001>

<llo_original>
// kernel: tpu_custom_call.1
$region0: #{tpu_custom_call.1}
  #allocation0 [shape = 'u32[]', space=smem, size = 0x4, offset = 0x4, fixed_abs, tag = 'smem constant byte address 0x4 - core index']
  #allocation1 [shape = 'u32[144,128]{1,0:T(1,128)}', space=vmem, size = 0x12000, scoped, tag = 'internal scratch']
  %s0 = inlined_call_operand.vmem [shape: f32[64,64], index: 0, kind: input, shape index: {}]
  %s1 = inlined_call_operand.vmem [shape: f32[64,32], index: 1, kind: input, shape index: {}]
  %s2 = inlined_call_operand.hbm [shape: f32[32,256], index: 2, kind: input, shape index: {}]
  %s3 = inlined_call_operand.vmem [shape: f32[1,256], index: 3, kind: input, shape index: {}]
  %s4 = inlined_call_operand.hbm [shape: f32[64,64], index: 4, kind: output, shape index: {}]
  %s5 = sld [smem:[#allocation0]]
  $region30: #{tpu_custom_call.1} parent=0
    _
  %s7 = ssub.s32 1, %s5
  %s8 = scalar_select 0, %s7, %s5
  $region1: #{tpu_custom_call.1} parent=0
    #allocation2 [shape = 'u8[32768]{0}', space=vmem, size = 0x8000, scoped, tag = 'input window, operand 2, single buffered']
    #allocation3 [shape = 's32[1]{0}', space=sflag, size = 0x4, scoped, tag = 'scoped memory for tpu_custom_call.1']
    #allocation4 [shape = 's32[1]{0}', space=sflag, size = 0x4, scoped, tag = 'scoped memory for tpu_custom_call.1']
    #allocation5 [shape = 'u8[32768]{0}', space=vmem, size = 0x8000, scoped, tag = 'output window, operand 0, single buffered']
    %9 = vsyncpa [#allocation3], 0
    %10 = vsyncpa [#allocation4], 0
    // Predicated region
    $region2: #{tpu_custom_call.1} parent=1 // pred_check
      _
    $region3: #{tpu_custom_call.1} parent=1 // pred_check_branch
      %12 = sbr.rel (0) target = $region5
    $region4: #{tpu_custom_call.1} parent=1 // pred_region
      _
    $region5: #{tpu_custom_call.1} parent=1 // pred_fallthru
      _
    // Predicated region
    $region6: #{tpu_custom_call.1} parent=1 // pred_check
      _
    $region7: #{tpu_custom_call.1} parent=1 // pred_check_branch
      %14 = sbr.rel (0) target = $region9
    $region8: #{tpu_custom_call.1} parent=1 // pred_region
      _
    $region9: #{tpu_custom_call.1} parent=1 // pred_fallthru
      _
    // Predicated region
    $region10: #{tpu_custom_call.1} parent=1 // pred_check
      _
    $region11: #{tpu_custom_call.1} parent=1 // pred_check_branch
      %16 = sbr.rel (0) target = $region13
    $region12: #{tpu_custom_call.1} parent=1 // pred_region
      %s18 = ssub.s32 1024, 1024
      %19 = vsyncadd [#allocation3], %s18
      %s20 = sshll.u32 [#allocation2], 4
      %s21 = int_to_ptr.vmem [resolvable:$true] %s20
      %26 = dma.hbm_to_vmem [thread:$0]  %s2, 1024, %s21, [#allocation3], 256, 256, 16
    $region13: #{tpu_custom_call.1} parent=1 // pred_fallthru
      _
    // Predicated region
    $region14: #{tpu_custom_call.1} parent=1 // pred_check
      _
    $region15: #{tpu_custom_call.1} parent=1 // pred_check_branch
      %28 = sbr.rel (0) target = $region17
    $region16: #{tpu_custom_call.1} parent=1 // pred_region
      _
    $region17: #{tpu_custom_call.1} parent=1 // pred_fallthru
      _
    // Predicated region
    $region18: #{tpu_custom_call.1} parent=1 // pred_check
      _
    $region19: #{tpu_custom_call.1} parent=1 // pred_check_branch
      %30 = sbr.rel (0) target = $region21
    $region20: #{tpu_custom_call.1} parent=1 // pred_region
      %31 = dma.done [#allocation3], 1024
    $region21: #{tpu_custom_call.1} parent=1 // pred_fallthru
      _
    %v32 = vld [vmem:[%s1] sm:$0xff]
    %v33 = vld [vmem:[%s1 + $0x8] sm:$0xff]
    %v34 = vld [vmem:[%s1 + $0x10] sm:$0xff]
    %v35 = vld [vmem:[%s1 + $0x18] sm:$0xff]
    %v36 = vld [vmem:[%s1 + $0x20] sm:$0xff]
    %v37 = vld [vmem:[%s1 + $0x28] sm:$0xff]
    %v38 = vld [vmem:[%s1 + $0x30] sm:$0xff]
    %v39 = vld [vmem:[%s1 + $0x38] sm:$0xff]
    %v40 = vld [vmem:[#allocation2] sm:$0xff]
    %v41 = vld [vmem:[#allocation2 + $0x8] sm:$0xff]
    %v42 = vld [vmem:[#allocation2 + $0x10] sm:$0xff]
    %v43 = vld [vmem:[#allocation2 + $0x18] sm:$0xff]
    %v44 = vld [vmem:[#allocation2 + $0x20] sm:$0xff]
    %v45 = vld [vmem:[#allocation2 + $0x28] sm:$0xff]
    %v46 = vld [vmem:[#allocation2 + $0x30] sm:$0xff]
    %v47 = vld [vmem:[#allocation2 + $0x38] sm:$0xff]
    %v48 = vld [vmem:[%s3] sm:$0x3]
    %v50 = vlaneseq
    %v51 = vshrl.u32 %v50, 7
    %v52 = vsub.s32 0, %v51
    %v53 = vrot.slane %v48, %v52
    %v54 = vlaneseq
    %v55 = vshrl.u32 %v54, 7
    %v56 = vsub.s32 1, %v55
    %v57 = vrot.slane %v48, %v56
    %vm60 = vcmask 261120
    %v62 = vsel %vm60, %v32, 0
    %v65 = vsel %vm60, %v33, 0
    %v68 = vsel %vm60, %v34, 0
    %v71 = vsel %vm60, %v35, 0
    %v74 = vsel %vm60, %v36, 0
    %v77 = vsel %vm60, %v37, 0
    %v80 = vsel %vm60, %v38, 0
    %v83 = vsel %vm60, %v39, 0
    %85 = vmatprep.subr.mxu0 0.0
    %86 = vmatpush1.msra.mxu0 0.0
    %87 = vmatprep.subr.mxu0 0.0
    %88 = vmatpush1.msra.mxu0 0.0
    %89 = vmatprep.subr.mxu0 0.0
    %90 = vmatpush1.msra.mxu0 0.0
    %91 = vmatprep.subr.mxu0 0.0
    %92 = vmatpush1.msra.mxu0 0.0
    %93 = vmatprep.subr.mxu0 0.0
    %94 = vmatpush1.msra.mxu0 0.0
    %95 = vmatprep.subr.mxu0 0.0
    %96 = vmatpush1.msra.mxu0 0.0
    %97 = vmatprep.subr.mxu0 0.0
    %98 = vmatpush1.msra.mxu0 0.0
    %99 = vmatprep.subr.mxu0 0.0
    %100 = vmatpush1.msra.mxu0 0.0
    %101 = vmatprep.subr.mxu0 0.0
    %102 = vmatpush1.msra.mxu0 0.0
    %103 = vmatprep.subr.mxu0 0.0
    %104 = vmatpush1.msra.mxu0 0.0
    %105 = vmatprep.subr.mxu0 0.0
    %106 = vmatpush1.msra.mxu0 0.0
    %107 = vmatprep.subr.mxu0 0.0
    %108 = vmatpush1.msra.mxu0 0.0
    %109 = vmatprep.subr.mxu0 %v47
    %110 = vmatpush1.msra.mxu0 %v46
    %111 = vmatprep.subr.mxu0 %v45
    %112 = vmatpush1.msra.mxu0 %v44
    %113 = vmatprep.subr.mxu0 %v43
    %114 = vmatpush1.msra.mxu0 %v42
    %115 = vmatprep.subr.mxu0 %v41
    %116 = vmatpush1.msra.mxu0 %v40
    %117 = vmatprep.subr.mxu0 0.0
    %118 = vmatpush2.msra.mxu0 0.0
    %119 = vmatprep.subr.mxu0 0.0
    %120 = vmatpush2.msra.mxu0 0.0
    %121 = vmatprep.subr.mxu0 0.0
    %122 = vmatpush2.msra.mxu0 0.0
    %123 = vmatprep.subr.mxu0 0.0
    %124 = vmatpush2.msra.mxu0 0.0
    %125 = vmatprep.subr.mxu0 0.0
    %126 = vmatpush2.msra.mxu0 0.0
    %127 = vmatprep.subr.mxu0 0.0
    %128 = vmatpush2.msra.mxu0 0.0
    %129 = vmatprep.subr.mxu0 0.0
    %130 = vmatpush2.msra.mxu0 0.0
    %131 = vmatprep.subr.mxu0 0.0
    %132 = vmatpush2.msra.mxu0 0.0
    %133 = vmatprep.subr.mxu0 0.0
    %134 = vmatpush2.msra.mxu0 0.0
    %135 = vmatprep.subr.mxu0 0.0
    %136 = vmatpush2.msra.mxu0 0.0
    %137 = vmatprep.subr.mxu0 0.0
    %138 = vmatpush2.msra.mxu0 0.0
    %139 = vmatprep.subr.mxu0 0.0
    %140 = vmatpush2.msra.mxu0 0.0
    %141 = vmatprep.subr.mxu0 0.0
    %142 = vmatpush2.msra.mxu0 0.0
    %143 = vmatprep.subr.mxu0 0.0
    %144 = vmatpush2.msra.mxu0 0.0
    %145 = vmatprep.subr.mxu0 0.0
    %146 = vmatpush2.msra.mxu0 0.0
    %147 = vmatprep.subr.mxu0 0.0
    %148 = vmatpush2.msra.mxu0 0.0
    %149 = vmatprep.mubr.f32.mxu0 0.0
    %150 = vmatmul.mubr.f32.gmra.mxu0 %v62
    %v151 = vpop.f32.mrf.mxu0
    %v152 = vadd.f32 %v53, %v151
    %v153 = vpop.f32.mrf.mxu0
    %v154 = vadd.f32 %v57, %v153
    %155 = vmatprep.mubr.f32.mxu0 0.0
    %156 = vmatmul.mubr.f32.gmra.mxu0 %v65
    %v157 = vpop.f32.mrf.mxu0
    %v158 = vadd.f32 %v53, %v157
    %v159 = vpop.f32.mrf.mxu0
    %v160 = vadd.f32 %v57, %v159
    %161 = vmatprep.mubr.f32.mxu0 0.0
    %162 = vmatmul.mubr.f32.gmra.mxu0 %v68
    %v163 = vpop.f32.mrf.mxu0
    %v164 = vadd.f32 %v53, %v163
    %v165 = vpop.f32.mrf.mxu0
    %v166 = vadd.f32 %v57, %v165
    %167 = vmatprep.mubr.f32.mxu0 0.0
    %168 = vmatmul.mubr.f32.gmra.mxu0 %v71
    %v169 = vpop.f32.mrf.mxu0
    %v170 = vadd.f32 %v53, %v169
    %v171 = vpop.f32.mrf.mxu0
    %v172 = vadd.f32 %v57, %v171
    %173 = vmatprep.mubr.f32.mxu0 0.0
    %174 = vmatmul.mubr.f32.gmra.mxu0 %v74
    %v175 = vpop.f32.mrf.mxu0
    %v176 = vadd.f32 %v53, %v175
    %v177 = vpop.f32.mrf.mxu0
    %v178 = vadd.f32 %v57, %v177
    %179 = vmatprep.mubr.f32.mxu0 0.0
    %180 = vmatmul.mubr.f32.gmra.mxu0 %v77
    %v181 = vpop.f32.mrf.mxu0
    %v182 = vadd.f32 %v53, %v181
    %v183 = vpop.f32.mrf.mxu0
    %v184 = vadd.f32 %v57, %v183
    %185 = vmatprep.mubr.f32.mxu0 0.0
    %186 = vmatmul.mubr.f32.gmra.mxu0 %v80
    %v187 = vpop.f32.mrf.mxu0
    %v188 = vadd.f32 %v53, %v187
    %v189 = vpop.f32.mrf.mxu0
    %v190 = vadd.f32 %v57, %v189
    %191 = vmatprep.mubr.f32.mxu0 0.0
    %192 = vmatmul.mubr.f32.gmra.mxu0 %v83
    %v193 = vpop.f32.mrf.mxu0
    %v194 = vadd.f32 %v53, %v193
    %v195 = vpop.f32.mrf.mxu0
    %v196 = vadd.f32 %v57, %v195
    %197 = vdwg.mxu0
    %v198 = vld [vmem:[%s0] sm:$0xff]
    %v199 = vld [vmem:[%s0 + $0x8] sm:$0xff]
    %v200 = vld [vmem:[%s0 + $0x10] sm:$0xff]
    %v201 = vld [vmem:[%s0 + $0x18] sm:$0xff]
    %v202 = vld [vmem:[%s0 + $0x20] sm:$0xff]
    %v203 = vld [vmem:[%s0 + $0x28] sm:$0xff]
    %v204 = vld [vmem:[%s0 + $0x30] sm:$0xff]
    %v205 = vld [vmem:[%s0 + $0x38] sm:$0xff]
    %v206 = vmul.f32 %v152, %v198
    %v207 = vmul.f32 %v158, %v199
    %v208 = vmul.f32 %v164, %v200
    %v209 = vmul.f32 %v170, %v201
    %v210 = vmul.f32 %v176, %v202
    %v211 = vmul.f32 %v182, %v203
    %v212 = vmul.f32 %v188, %v204
    %v213 = vmul.f32 %v194, %v205
    %v214 = vadd.f32 %v206, %v154
    %v215 = vadd.f32 %v207, %v160
    %v216 = vadd.f32 %v208, %v166
    %v217 = vadd.f32 %v209, %v172
    %v218 = vadd.f32 %v210, %v178
    %v219 = vadd.f32 %v211, %v184
    %v220 = vadd.f32 %v212, %v190
    %v221 = vadd.f32 %v213, %v196
    %vm222 = vcmask 523264
    %223 = vst.msk [vmem:[#allocation5] sm:$0xff] %vm222, %v214
    %224 = vst.msk [vmem:[#allocation5 + $0x8] sm:$0xff] %vm222, %v215
    %225 = vst.msk [vmem:[#allocation5 + $0x10] sm:$0xff] %vm222, %v216
    %226 = vst.msk [vmem:[#allocation5 + $0x18] sm:$0xff] %vm222, %v217
    %227 = vst.msk [vmem:[#allocation5 + $0x20] sm:$0xff] %vm222, %v218
    %228 = vst.msk [vmem:[#allocation5 + $0x28] sm:$0xff] %vm222, %v219
    %229 = vst.msk [vmem:[#allocation5 + $0x30] sm:$0xff] %vm222, %v220
    %230 = vst.msk [vmem:[#allocation5 + $0x38] sm:$0xff] %vm222, %v221
    // Predicated region
    $region22: #{tpu_custom_call.1} parent=1 // pred_check
      _
    $region23: #{tpu_custom_call.1} parent=1 // pred_check_branch
      %232 = sbr.rel (0) target = $region25
    $region24: #{tpu_custom_call.1} parent=1 // pred_region
      %s234 = ssub.s32 1024, 1024
      %235 = vsyncadd [#allocation4], %s234
      %s236 = sshll.u32 [#allocation5], 4
      %s237 = int_to_ptr.vmem [resolvable:$true] %s236
      %242 = dma.vmem_to_hbm [thread:$0]  %s237, 1024, %s4, [#allocation4], 128, 128, 8
    $region25: #{tpu_custom_call.1} parent=1 // pred_fallthru
      _
    // Predicated region
    $region26: #{tpu_custom_call.1} parent=1 // pred_check
      _
    $region27: #{tpu_custom_call.1} parent=1 // pred_check_branch
      %244 = sbr.rel (0) target = $region29
    $region28: #{tpu_custom_call.1} parent=1 // pred_region
      %245 = dma.done [#allocation4], 1024
    $region29: #{tpu_custom_call.1} parent=1 // pred_fallthru
      _
    %246 = vsyncpa [#allocation3], 1
    %247 = vsyncpa [#allocation4], 1

</llo_original>
